<compile_context>
chip_gen: v5e
topology: v5e:2x2
jax: 0.10.0
libtpu: 0.0.40
codegen_flags: <defaults>
</compile_context>

<pallas_src>
import functools

import numpy as np

import jax
import jax.numpy as jnp
from jax.experimental import pallas as pl
from jax.experimental.pallas import tpu as pltpu


def _sepconv_kernel(x_ref, dw_ref, pw_ref, wm_ref, o_ref, xp_ref, *, K, P, W, OFF):
    """Separable conv on one batch block, flattened-spatial (lane-dense) layout.

    x_ref : (nb, C, HW)        input block (HW = Hi*Wi of the kernel grid)
    dw_ref: (C, K*K)           depthwise weights (resident across grid)
    pw_ref: (O, C)             pointwise weights (resident across grid)
    wm_ref: (K, HW)            per-kw row-wrap lane masks (resident, 0/1)
    o_ref : (nb, O, HW)        output block
    xp_ref: (C, OFF+HW+RPAD)   lane-zero-padded scratch for shifted tap reads
    """
    nb, C, HW = x_ref.shape
    total = xp_ref.shape[1]
    rpad = total - OFF - HW

    # Zero only the pad strips, every invocation (scratch is per-core, so do
    # not rely on a "step 0 only" init).  The centre is overwritten per image.
    if OFF > 0:
        xp_ref[:, pl.ds(0, OFF)] = jnp.zeros((C, OFF), xp_ref.dtype)
    if rpad > 0:
        xp_ref[:, pl.ds(OFF + HW, rpad)] = jnp.zeros((C, rpad), xp_ref.dtype)

    # Hoist resident weights / masks out of the batch & tap loops.
    dw_all = dw_ref[...].astype(jnp.float32)                 # (C, K*K)
    w_cols = [dw_all[:, t:t + 1] for t in range(K * K)]      # K*K x (C, 1)
    wm = wm_ref[...].astype(jnp.float32)                     # (K, HW)
    pw = pw_ref[...].astype(jnp.float32)                     # (O, C)

    for n in range(nb):
        # One lane-aligned (OFF % 128 == 0), lane-dense store of the image
        # into the zero-padded scratch.
        xp_ref[:, pl.ds(OFF, HW)] = x_ref[n]

        # Depthwise: K*K VPU FMA passes over lane-shifted views.  Vertical
        # out-of-range taps land in the zero pads; horizontal row-wrap taps
        # are masked per kw.
        acc = jnp.zeros((C, HW), jnp.float32)
        for kh in range(K):
            for kw in range(K):
                t = kh * K + kw
                s = (kh - P) * W + (kw - P)            # flattened-spatial shift
                tap = xp_ref[:, pl.ds(OFF + s, HW)].astype(jnp.float32)
                if kw != P:                            # row-wrap mask needed
                    tap = tap * wm[kw:kw + 1, :]
                acc = acc + tap * w_cols[t]

        # Pointwise: one MXU matmul, HW (multiple of 128 here) is the lane dim.
        out = jnp.dot(pw, acc, preferred_element_type=jnp.float32)   # (O, HW)
        o_ref[n] = out.astype(o_ref.dtype)


def _round_up(x, m):
    return ((x + m - 1) // m) * m


def _tensorcores_per_device():
    """Best-effort TensorCores per JAX device (v4/v5p megacore and v7x have 2)."""
    try:
        kind = jax.devices()[0].device_kind.lower()
    except Exception:
        return 1
    return 2 if any(t in kind for t in ("v4", "v5p", "v7", "7x")) else 1


def _choose_batch_block(n, per_image_bytes, n_cores, budget_bytes=16 << 20):
    """Largest batch block (divisor of n) fitting the VMEM budget, keeping
    >= 2 grid steps per TensorCore on multi-core chips for pipelining."""
    divisors = [d for d in range(1, n + 1) if n % d == 0]
    fits = [d for d in divisors if 2 * d * per_image_bytes <= budget_bytes] or [1]
    if n_cores > 1:
        target = min(n, 2 * n_cores)
        good = [d for d in fits if n // d >= target]
        return max(good) if good else min(fits)
    return max(fits)     # single TC: biggest block that fits (fewest steps)


def separable_conv2d(x, dw, pw, padding):
    """x: (N,C,H,W), dw: (C,K,K), pw: (O,C) -> (N,O,Ho,Wo).  bias=False."""
    N, C, H, W = x.shape
    K = dw.shape[-1]
    O = pw.shape[0]
    Ho = H + 2 * padding - K + 1
    Wo = W + 2 * padding - K + 1

    same = (2 * padding == K - 1)
    if same:
        x_in, Hi, Wi, P = x, H, W, padding           # padding handled in-kernel
    else:
        # TODO(synk): non-"same" padding falls back to an XLA pad (extra HBM
        # round trip) + crop; fold it into the kernel if this path matters.
        x_in = jnp.pad(x, ((0, 0), (0, 0), (padding, padding), (padding, padding)))
        Hi, Wi, P = x_in.shape[2], x_in.shape[3], 0
    HWi = Hi * Wi

    # Free, row-major-compatible reshapes (no data movement).
    x_flat = x_in.reshape(N, C, HWi)
    dw_flat = dw.reshape(C, K * K)

    # Per-kw row-wrap lane masks, precomputed once (constants, not hot-loop work).
    w_of_i = np.arange(HWi, dtype=np.int64) % Wi
    masks_np = np.ones((K, HWi), dtype=np.float32)
    for kw in range(K):
        d = kw - P
        if d > 0:
            masks_np[kw] = (w_of_i < (Wi - d)).astype(np.float32)
        elif d < 0:
            masks_np[kw] = (w_of_i >= (-d)).astype(np.float32)
    masks = jnp.asarray(masks_np, dtype=x.dtype)

    # Lane-zero-padded scratch geometry.  OFF (left pad) is a multiple of 128
    # so the per-image centre store is a lane-aligned, unmasked vst.
    lpad_need = P * (Wi + 1)                         # max negative flat shift
    rpad_need = (K - 1 - P) * (Wi + 1)               # max positive flat shift
    OFF = _round_up(lpad_need, 128)
    RPAD = _round_up(max(rpad_need, 1), 128)

    itemsize = jnp.dtype(x.dtype).itemsize
    per_image_bytes = (C + O) * HWi * itemsize       # in + out block, per image
    nb = _choose_batch_block(N, per_image_bytes, _tensorcores_per_device())
    grid_n = N // nb

    # TODO(synk): for large C/H/W additionally tile over channels and H-row
    # bands (K-1 row halo), set vmem_limit_bytes for the ~48 MiB v7x budget,
    # consider pl.Buffered(3) on the input spec, and carry tiles in bf16
    # (keeping f32 accumulation) to halve VMEM/HBM bytes on v6e/v7x.

    kernel = functools.partial(_sepconv_kernel, K=K, P=P, W=Wi, OFF=OFF)

    y_flat = pl.pallas_call(
        kernel,
        out_shape=jax.ShapeDtypeStruct((N, O, HWi), x.dtype),
        grid_spec=pltpu.PrefetchScalarGridSpec(
            num_scalar_prefetch=0,
            grid=(grid_n,),
            in_specs=[
                pl.BlockSpec((nb, C, HWi), lambda i: (i, 0, 0)),
                pl.BlockSpec((C, K * K), lambda i: (0, 0)),    # resident weights
                pl.BlockSpec((O, C), lambda i: (0, 0)),        # resident weights
                pl.BlockSpec((K, HWi), lambda i: (0, 0)),      # resident masks
            ],
            out_specs=pl.BlockSpec((nb, O, HWi), lambda i: (i, 0, 0)),
            scratch_shapes=[pltpu.VMEM((C, OFF + HWi + RPAD), x.dtype)],
        ),
        compiler_params=pltpu.CompilerParams(
            dimension_semantics=("parallel",)),
    )(x_flat, dw_flat, pw, masks)

    # Lane-dense (N, O, Hi*Wi) -> NCHW; free reshape (row-major compatible).
    y = y_flat.reshape(N, O, Hi, Wi)
    if same:
        return y
    return y[:, :, :Ho, :Wo]


def _reference(x, dw, pw, padding):
    """Plain-JAX reference of SeparableConv2d.forward (bias=False)."""
    xp = jnp.pad(x, ((0, 0), (0, 0), (padding, padding), (padding, padding)))
    K = dw.shape[-1]
    H = xp.shape[2] - K + 1
    W = xp.shape[3] - K + 1
    depth = jnp.zeros(x.shape[:2] + (H, W), jnp.float32)
    for kh in range(K):
        for kw in range(K):
            depth = depth + xp[:, :, kh:kh + H, kw:kw + W] * dw[:, kh, kw][None, :, None, None]
    return jnp.einsum('oc,nchw->nohw', pw, depth)


if __name__ == "__main__":
    # Consistent with SeparableConv2d(in_channels=4, out_channels=8,
    # kernel_size=3, padding=1, bias=False)
    N, C, O, H, W, K, PAD = 2, 4, 8, 16, 16, 3, 1

    key = jax.random.PRNGKey(0)
    kx, kd, kp = jax.random.split(key, 3)

    x = jax.random.normal(kx, (N, C, H, W), dtype=jnp.float32)
    # PyTorch shapes (C,1,K,K) and (O,C,1,1) squeezed to (C,K,K) and (O,C).
    dw = jax.random.normal(kd, (C, K, K), dtype=jnp.float32) * (1.0 / (K * K)) ** 0.5
    pw = jax.random.normal(kp, (O, C), dtype=jnp.float32) * (1.0 / C) ** 0.5

    y = separable_conv2d(x, dw, pw, PAD)
    y = jax.block_until_ready(y)

    y_ref = _reference(x, dw, pw, PAD)
    assert y.shape == (N, O, H, W)
    assert jnp.allclose(y, y_ref, atol=1e-4, rtol=1e-4), "mismatch vs reference"

    print("KERNEL_OK")
</pallas_src>

<mosaic_0001>
module attributes {stable_mosaic.version = 11 : i64} {
  func.func @_sepconv_kernel(%arg0: i32, %arg1: memref<2x4x256xf32, #tpu.memory_space<vmem>>, %arg2: memref<4x9xf32, #tpu.memory_space<vmem>>, %arg3: memref<8x4xf32, #tpu.memory_space<vmem>>, %arg4: memref<3x256xf32, #tpu.memory_space<vmem>>, %arg5: memref<2x8x256xf32, #tpu.memory_space<vmem>>, %arg6: memref<4x512xf32, #tpu.memory_space<vmem>>) attributes {dimension_semantics = [#tpu.dimension_semantics<parallel>], iteration_bounds = array<i64: 1>, scalar_prefetch = 0 : i64, scratch_operands = 1 : i64, tpu.core_type = #tpu.core_type<tc>, window_params = [{transform_indices = @transform_0, window_bounds = array<i64: 2, 4, 256>}, {pipeline_mode = #tpu.pipeline_mode<synchronous>, transform_indices = @transform_1, window_bounds = array<i64: 4, 9>}, {pipeline_mode = #tpu.pipeline_mode<synchronous>, transform_indices = @transform_2, window_bounds = array<i64: 8, 4>}, {pipeline_mode = #tpu.pipeline_mode<synchronous>, transform_indices = @transform_3, window_bounds = array<i64: 3, 256>}, {transform_indices = @transform_4, window_bounds = array<i64: 2, 8, 256>}]} {
    %cst = arith.constant 0.000000e+00 : f32
    %0 = vector.broadcast %cst : f32 to vector<4x128xf32>
    %c0 = arith.constant 0 : index
    %c0_0 = arith.constant 0 : index
    %1 = vector.load %arg6[%c0, %c0_0] : memref<4x512xf32, #tpu.memory_space<vmem>>, vector<4x128xf32>
    tpu.vector_store %arg6[%c0, %c0_0], %0 {strides = array<i32>} : memref<4x512xf32, #tpu.memory_space<vmem>>, vector<4x128xf32>,
    %cst_1 = arith.constant 0.000000e+00 : f32
    %2 = vector.broadcast %cst_1 : f32 to vector<4x128xf32>
    %c0_2 = arith.constant 0 : index
    %c384 = arith.constant 384 : index
    %3 = vector.load %arg6[%c0_2, %c384] : memref<4x512xf32, #tpu.memory_space<vmem>>, vector<4x128xf32>
    tpu.vector_store %arg6[%c0_2, %c384], %2 {strides = array<i32>} : memref<4x512xf32, #tpu.memory_space<vmem>>, vector<4x128xf32>,
    %c0_3 = arith.constant 0 : index
    %c0_4 = arith.constant 0 : index
    %4 = vector.load %arg2[%c0_3, %c0_4] : memref<4x9xf32, #tpu.memory_space<vmem>>, vector<4x9xf32>
    %5 = vector.extract_strided_slice %4 {offsets = [0, 0], sizes = [4, 1], strides = [1, 1]} : vector<4x9xf32> to vector<4x1xf32>
    %6 = vector.extract_strided_slice %4 {offsets = [0, 1], sizes = [4, 1], strides = [1, 1]} : vector<4x9xf32> to vector<4x1xf32>
    %7 = vector.extract_strided_slice %4 {offsets = [0, 2], sizes = [4, 1], strides = [1, 1]} : vector<4x9xf32> to vector<4x1xf32>
    %8 = vector.extract_strided_slice %4 {offsets = [0, 3], sizes = [4, 1], strides = [1, 1]} : vector<4x9xf32> to vector<4x1xf32>
    %9 = vector.extract_strided_slice %4 {offsets = [0, 4], sizes = [4, 1], strides = [1, 1]} : vector<4x9xf32> to vector<4x1xf32>
    %10 = vector.extract_strided_slice %4 {offsets = [0, 5], sizes = [4, 1], strides = [1, 1]} : vector<4x9xf32> to vector<4x1xf32>
    %11 = vector.extract_strided_slice %4 {offsets = [0, 6], sizes = [4, 1], strides = [1, 1]} : vector<4x9xf32> to vector<4x1xf32>
    %12 = vector.extract_strided_slice %4 {offsets = [0, 7], sizes = [4, 1], strides = [1, 1]} : vector<4x9xf32> to vector<4x1xf32>
    %13 = vector.extract_strided_slice %4 {offsets = [0, 8], sizes = [4, 1], strides = [1, 1]} : vector<4x9xf32> to vector<4x1xf32>
    %c0_5 = arith.constant 0 : index
    %c0_6 = arith.constant 0 : index
    %14 = vector.load %arg4[%c0_5, %c0_6] : memref<3x256xf32, #tpu.memory_space<vmem>>, vector<3x256xf32>
    %c0_7 = arith.constant 0 : index
    %c0_8 = arith.constant 0 : index
    %15 = vector.load %arg3[%c0_7, %c0_8] : memref<8x4xf32, #tpu.memory_space<vmem>>, vector<8x4xf32>
    %c0_9 = arith.constant 0 : index
    %c0_10 = arith.constant 0 : index
    %c0_11 = arith.constant 0 : index
    %16 = vector.load %arg1[%c0_9, %c0_10, %c0_11] : memref<2x4x256xf32, #tpu.memory_space<vmem>>, vector<1x4x256xf32>
    %17 = vector.shape_cast %16 : vector<1x4x256xf32> to vector<4x256xf32>
    %c0_12 = arith.constant 0 : index
    %c128 = arith.constant 128 : index
    %18 = vector.load %arg6[%c0_12, %c128] : memref<4x512xf32, #tpu.memory_space<vmem>>, vector<4x256xf32>
    tpu.vector_store %arg6[%c0_12, %c128], %17 {strides = array<i32>} : memref<4x512xf32, #tpu.memory_space<vmem>>, vector<4x256xf32>,
    %cst_13 = arith.constant 0.000000e+00 : f32
    %19 = vector.broadcast %cst_13 : f32 to vector<4x256xf32>
    %c0_14 = arith.constant 0 : index
    %c111 = arith.constant 111 : index
    %20 = vector.load %arg6[%c0_14, %c111] : memref<4x512xf32, #tpu.memory_space<vmem>>, vector<4x256xf32>
    %21 = vector.extract_strided_slice %14 {offsets = [0, 0], sizes = [1, 256], strides = [1, 1]} : vector<3x256xf32> to vector<1x256xf32>
    %22 = vector.broadcast %21 : vector<1x256xf32> to vector<4x256xf32>
    %23 = arith.mulf %20, %22 : vector<4x256xf32>
    %24 = vector.broadcast %5 : vector<4x1xf32> to vector<4x256xf32>
    %25 = arith.mulf %23, %24 : vector<4x256xf32>
    %26 = arith.addf %19, %25 : vector<4x256xf32>
    %c0_15 = arith.constant 0 : index
    %c112 = arith.constant 112 : index
    %27 = vector.load %arg6[%c0_15, %c112] : memref<4x512xf32, #tpu.memory_space<vmem>>, vector<4x256xf32>
    %28 = vector.broadcast %6 : vector<4x1xf32> to vector<4x256xf32>
    %29 = arith.mulf %27, %28 : vector<4x256xf32>
    %30 = arith.addf %26, %29 : vector<4x256xf32>
    %c0_16 = arith.constant 0 : index
    %c113 = arith.constant 113 : index
    %31 = vector.load %arg6[%c0_16, %c113] : memref<4x512xf32, #tpu.memory_space<vmem>>, vector<4x256xf32>
    %32 = vector.extract_strided_slice %14 {offsets = [2, 0], sizes = [1, 256], strides = [1, 1]} : vector<3x256xf32> to vector<1x256xf32>
    %33 = vector.broadcast %32 : vector<1x256xf32> to vector<4x256xf32>
    %34 = arith.mulf %31, %33 : vector<4x256xf32>
    %35 = vector.broadcast %7 : vector<4x1xf32> to vector<4x256xf32>
    %36 = arith.mulf %34, %35 : vector<4x256xf32>
    %37 = arith.addf %30, %36 : vector<4x256xf32>
    %c0_17 = arith.constant 0 : index
    %c127 = arith.constant 127 : index
    %38 = vector.load %arg6[%c0_17, %c127] : memref<4x512xf32, #tpu.memory_space<vmem>>, vector<4x256xf32>
    %39 = vector.extract_strided_slice %14 {offsets = [0, 0], sizes = [1, 256], strides = [1, 1]} : vector<3x256xf32> to vector<1x256xf32>
    %40 = vector.broadcast %39 : vector<1x256xf32> to vector<4x256xf32>
    %41 = arith.mulf %38, %40 : vector<4x256xf32>
    %42 = vector.broadcast %8 : vector<4x1xf32> to vector<4x256xf32>
    %43 = arith.mulf %41, %42 : vector<4x256xf32>
    %44 = arith.addf %37, %43 : vector<4x256xf32>
    %c0_18 = arith.constant 0 : index
    %c128_19 = arith.constant 128 : index
    %45 = vector.load %arg6[%c0_18, %c128_19] : memref<4x512xf32, #tpu.memory_space<vmem>>, vector<4x256xf32>
    %46 = vector.broadcast %9 : vector<4x1xf32> to vector<4x256xf32>
    %47 = arith.mulf %45, %46 : vector<4x256xf32>
    %48 = arith.addf %44, %47 : vector<4x256xf32>
    %c0_20 = arith.constant 0 : index
    %c129 = arith.constant 129 : index
    %49 = vector.load %arg6[%c0_20, %c129] : memref<4x512xf32, #tpu.memory_space<vmem>>, vector<4x256xf32>
    %50 = vector.extract_strided_slice %14 {offsets = [2, 0], sizes = [1, 256], strides = [1, 1]} : vector<3x256xf32> to vector<1x256xf32>
    %51 = vector.broadcast %50 : vector<1x256xf32> to vector<4x256xf32>
    %52 = arith.mulf %49, %51 : vector<4x256xf32>
    %53 = vector.broadcast %10 : vector<4x1xf32> to vector<4x256xf32>
    %54 = arith.mulf %52, %53 : vector<4x256xf32>
    %55 = arith.addf %48, %54 : vector<4x256xf32>
    %c0_21 = arith.constant 0 : index
    %c143 = arith.constant 143 : index
    %56 = vector.load %arg6[%c0_21, %c143] : memref<4x512xf32, #tpu.memory_space<vmem>>, vector<4x256xf32>
    %57 = vector.extract_strided_slice %14 {offsets = [0, 0], sizes = [1, 256], strides = [1, 1]} : vector<3x256xf32> to vector<1x256xf32>
    %58 = vector.broadcast %57 : vector<1x256xf32> to vector<4x256xf32>
    %59 = arith.mulf %56, %58 : vector<4x256xf32>
    %60 = vector.broadcast %11 : vector<4x1xf32> to vector<4x256xf32>
    %61 = arith.mulf %59, %60 : vector<4x256xf32>
    %62 = arith.addf %55, %61 : vector<4x256xf32>
    %c0_22 = arith.constant 0 : index
    %c144 = arith.constant 144 : index
    %63 = vector.load %arg6[%c0_22, %c144] : memref<4x512xf32, #tpu.memory_space<vmem>>, vector<4x256xf32>
    %64 = vector.broadcast %12 : vector<4x1xf32> to vector<4x256xf32>
    %65 = arith.mulf %63, %64 : vector<4x256xf32>
    %66 = arith.addf %62, %65 : vector<4x256xf32>
    %c0_23 = arith.constant 0 : index
    %c145 = arith.constant 145 : index
    %67 = vector.load %arg6[%c0_23, %c145] : memref<4x512xf32, #tpu.memory_space<vmem>>, vector<4x256xf32>
    %68 = vector.extract_strided_slice %14 {offsets = [2, 0], sizes = [1, 256], strides = [1, 1]} : vector<3x256xf32> to vector<1x256xf32>
    %69 = vector.broadcast %68 : vector<1x256xf32> to vector<4x256xf32>
    %70 = arith.mulf %67, %69 : vector<4x256xf32>
    %71 = vector.broadcast %13 : vector<4x1xf32> to vector<4x256xf32>
    %72 = arith.mulf %70, %71 : vector<4x256xf32>
    %73 = arith.addf %66, %72 : vector<4x256xf32>
    %cst_24 = arith.constant dense<0.000000e+00> : vector<8x256xf32>
    %74 = tpu.matmul %15, %73, %cst_24 {dimension_numbers = #tpu.dot_dimension_numbers<[1], [0], [0], [1], [0, 0, 1, 1], [], []>} : vector<8x4xf32>, vector<4x256xf32>, vector<8x256xf32> -> vector<8x256xf32>
    %c0_25 = arith.constant 0 : index
    %c0_26 = arith.constant 0 : index
    %c0_27 = arith.constant 0 : index
    %75 = vector.load %arg5[%c0_25, %c0_26, %c0_27] : memref<2x8x256xf32, #tpu.memory_space<vmem>>, vector<1x8x256xf32>
    %76 = vector.shape_cast %75 : vector<1x8x256xf32> to vector<8x256xf32>
    %77 = vector.shape_cast %74 : vector<8x256xf32> to vector<1x8x256xf32>
    tpu.vector_store %arg5[%c0_25, %c0_26, %c0_27], %77 {strides = array<i32>} : memref<2x8x256xf32, #tpu.memory_space<vmem>>, vector<1x8x256xf32>,
    %c1 = arith.constant 1 : index
    %c0_28 = arith.constant 0 : index
    %c0_29 = arith.constant 0 : index
    %78 = vector.load %arg1[%c1, %c0_28, %c0_29] : memref<2x4x256xf32, #tpu.memory_space<vmem>>, vector<1x4x256xf32>
    %79 = vector.shape_cast %78 : vector<1x4x256xf32> to vector<4x256xf32>
    %c0_30 = arith.constant 0 : index
    %c128_31 = arith.constant 128 : index
    %80 = vector.load %arg6[%c0_30, %c128_31] : memref<4x512xf32, #tpu.memory_space<vmem>>, vector<4x256xf32>
    tpu.vector_store %arg6[%c0_30, %c128_31], %79 {strides = array<i32>} : memref<4x512xf32, #tpu.memory_space<vmem>>, vector<4x256xf32>,
    %cst_32 = arith.constant 0.000000e+00 : f32
    %81 = vector.broadcast %cst_32 : f32 to vector<4x256xf32>
    %c0_33 = arith.constant 0 : index
    %c111_34 = arith.constant 111 : index
    %82 = vector.load %arg6[%c0_33, %c111_34] : memref<4x512xf32, #tpu.memory_space<vmem>>, vector<4x256xf32>
    %83 = vector.extract_strided_slice %14 {offsets = [0, 0], sizes = [1, 256], strides = [1, 1]} : vector<3x256xf32> to vector<1x256xf32>
    %84 = vector.broadcast %83 : vector<1x256xf32> to vector<4x256xf32>
    %85 = arith.mulf %82, %84 : vector<4x256xf32>
    %86 = vector.broadcast %5 : vector<4x1xf32> to vector<4x256xf32>
    %87 = arith.mulf %85, %86 : vector<4x256xf32>
    %88 = arith.addf %81, %87 : vector<4x256xf32>
    %c0_35 = arith.constant 0 : index
    %c112_36 = arith.constant 112 : index
    %89 = vector.load %arg6[%c0_35, %c112_36] : memref<4x512xf32, #tpu.memory_space<vmem>>, vector<4x256xf32>
    %90 = vector.broadcast %6 : vector<4x1xf32> to vector<4x256xf32>
    %91 = arith.mulf %89, %90 : vector<4x256xf32>
    %92 = arith.addf %88, %91 : vector<4x256xf32>
    %c0_37 = arith.constant 0 : index
    %c113_38 = arith.constant 113 : index
    %93 = vector.load %arg6[%c0_37, %c113_38] : memref<4x512xf32, #tpu.memory_space<vmem>>, vector<4x256xf32>
    %94 = vector.extract_strided_slice %14 {offsets = [2, 0], sizes = [1, 256], strides = [1, 1]} : vector<3x256xf32> to vector<1x256xf32>
    %95 = vector.broadcast %94 : vector<1x256xf32> to vector<4x256xf32>
    %96 = arith.mulf %93, %95 : vector<4x256xf32>
    %97 = vector.broadcast %7 : vector<4x1xf32> to vector<4x256xf32>
    %98 = arith.mulf %96, %97 : vector<4x256xf32>
    %99 = arith.addf %92, %98 : vector<4x256xf32>
    %c0_39 = arith.constant 0 : index
    %c127_40 = arith.constant 127 : index
    %100 = vector.load %arg6[%c0_39, %c127_40] : memref<4x512xf32, #tpu.memory_space<vmem>>, vector<4x256xf32>
    %101 = vector.extract_strided_slice %14 {offsets = [0, 0], sizes = [1, 256], strides = [1, 1]} : vector<3x256xf32> to vector<1x256xf32>
    %102 = vector.broadcast %101 : vector<1x256xf32> to vector<4x256xf32>
    %103 = arith.mulf %100, %102 : vector<4x256xf32>
    %104 = vector.broadcast %8 : vector<4x1xf32> to vector<4x256xf32>
    %105 = arith.mulf %103, %104 : vector<4x256xf32>
    %106 = arith.addf %99, %105 : vector<4x256xf32>
    %c0_41 = arith.constant 0 : index
    %c128_42 = arith.constant 128 : index
    %107 = vector.load %arg6[%c0_41, %c128_42] : memref<4x512xf32, #tpu.memory_space<vmem>>, vector<4x256xf32>
    %108 = vector.broadcast %9 : vector<4x1xf32> to vector<4x256xf32>
    %109 = arith.mulf %107, %108 : vector<4x256xf32>
    %110 = arith.addf %106, %109 : vector<4x256xf32>
    %c0_43 = arith.constant 0 : index
    %c129_44 = arith.constant 129 : index
    %111 = vector.load %arg6[%c0_43, %c129_44] : memref<4x512xf32, #tpu.memory_space<vmem>>, vector<4x256xf32>
    %112 = vector.extract_strided_slice %14 {offsets = [2, 0], sizes = [1, 256], strides = [1, 1]} : vector<3x256xf32> to vector<1x256xf32>
    %113 = vector.broadcast %112 : vector<1x256xf32> to vector<4x256xf32>
    %114 = arith.mulf %111, %113 : vector<4x256xf32>
    %115 = vector.broadcast %10 : vector<4x1xf32> to vector<4x256xf32>
    %116 = arith.mulf %114, %115 : vector<4x256xf32>
    %117 = arith.addf %110, %116 : vector<4x256xf32>
    %c0_45 = arith.constant 0 : index
    %c143_46 = arith.constant 143 : index
    %118 = vector.load %arg6[%c0_45, %c143_46] : memref<4x512xf32, #tpu.memory_space<vmem>>, vector<4x256xf32>
    %119 = vector.extract_strided_slice %14 {offsets = [0, 0], sizes = [1, 256], strides = [1, 1]} : vector<3x256xf32> to vector<1x256xf32>
    %120 = vector.broadcast %119 : vector<1x256xf32> to vector<4x256xf32>
    %121 = arith.mulf %118, %120 : vector<4x256xf32>
    %122 = vector.broadcast %11 : vector<4x1xf32> to vector<4x256xf32>
    %123 = arith.mulf %121, %122 : vector<4x256xf32>
    %124 = arith.addf %117, %123 : vector<4x256xf32>
    %c0_47 = arith.constant 0 : index
    %c144_48 = arith.constant 144 : index
    %125 = vector.load %arg6[%c0_47, %c144_48] : memref<4x512xf32, #tpu.memory_space<vmem>>, vector<4x256xf32>
    %126 = vector.broadcast %12 : vector<4x1xf32> to vector<4x256xf32>
    %127 = arith.mulf %125, %126 : vector<4x256xf32>
    %128 = arith.addf %124, %127 : vector<4x256xf32>
    %c0_49 = arith.constant 0 : index
    %c145_50 = arith.constant 145 : index
    %129 = vector.load %arg6[%c0_49, %c145_50] : memref<4x512xf32, #tpu.memory_space<vmem>>, vector<4x256xf32>
    %130 = vector.extract_strided_slice %14 {offsets = [2, 0], sizes = [1, 256], strides = [1, 1]} : vector<3x256xf32> to vector<1x256xf32>
    %131 = vector.broadcast %130 : vector<1x256xf32> to vector<4x256xf32>
    %132 = arith.mulf %129, %131 : vector<4x256xf32>
    %133 = vector.broadcast %13 : vector<4x1xf32> to vector<4x256xf32>
    %134 = arith.mulf %132, %133 : vector<4x256xf32>
    %135 = arith.addf %128, %134 : vector<4x256xf32>
    %cst_51 = arith.constant dense<0.000000e+00> : vector<8x256xf32>
    %136 = tpu.matmul %15, %135, %cst_51 {dimension_numbers = #tpu.dot_dimension_numbers<[1], [0], [0], [1], [0, 0, 1, 1], [], []>} : vector<8x4xf32>, vector<4x256xf32>, vector<8x256xf32> -> vector<8x256xf32>
    %c1_52 = arith.constant 1 : index
    %c0_53 = arith.constant 0 : index
    %c0_54 = arith.constant 0 : index
    %137 = vector.load %arg5[%c1_52, %c0_53, %c0_54] : memref<2x8x256xf32, #tpu.memory_space<vmem>>, vector<1x8x256xf32>
    %138 = vector.shape_cast %137 : vector<1x8x256xf32> to vector<8x256xf32>
    %139 = vector.shape_cast %136 : vector<8x256xf32> to vector<1x8x256xf32>
    tpu.vector_store %arg5[%c1_52, %c0_53, %c0_54], %139 {strides = array<i32>} : memref<2x8x256xf32, #tpu.memory_space<vmem>>, vector<1x8x256xf32>,
    return
  }
  func.func @transform_0(%arg0: i32) -> (i32, i32, i32) {
    %c0_i32 = arith.constant 0 : i32
    %c0_i32_0 = arith.constant 0 : i32
    %c0_i32_1 = arith.constant 0 : i32
    return %arg0, %c0_i32, %c0_i32_0 : i32, i32, i32
  }
  func.func @transform_1(%arg0: i32) -> (i32, i32) {
    %c0_i32 = arith.constant 0 : i32
    %c0_i32_0 = arith.constant 0 : i32
    %c0_i32_1 = arith.constant 0 : i32
    return %c0_i32, %c0_i32_0 : i32, i32
  }
  func.func @transform_2(%arg0: i32) -> (i32, i32) {
    %c0_i32 = arith.constant 0 : i32
    %c0_i32_0 = arith.constant 0 : i32
    %c0_i32_1 = arith.constant 0 : i32
    return %c0_i32, %c0_i32_0 : i32, i32
  }
  func.func @transform_3(%arg0: i32) -> (i32, i32) {
    %c0_i32 = arith.constant 0 : i32
    %c0_i32_0 = arith.constant 0 : i32
    %c0_i32_1 = arith.constant 0 : i32
    return %c0_i32, %c0_i32_0 : i32, i32
  }
  func.func @transform_4(%arg0: i32) -> (i32, i32, i32) {
    %c0_i32 = arith.constant 0 : i32
    %c0_i32_0 = arith.constant 0 : i32
    %c0_i32_1 = arith.constant 0 : i32
    return %arg0, %c0_i32, %c0_i32_0 : i32, i32, i32
  }
}

</mosaic_0001>

<llo_original>
// kernel: tpu_custom_call.1
$region0: #{tpu_custom_call.1}
  #allocation0 [shape = 'u32[]', space=smem, size = 0x4, offset = 0x4, fixed_abs, tag = 'smem constant byte address 0x4 - core index']
  #allocation1 [shape = 'u32[72,128]{1,0:T(1,128)}', space=vmem, size = 0x9000, scoped, tag = 'internal scratch']
  #allocation2 [shape = 'f32[4,512]{1,0:T(4,128)}', space=vmem, size = 0x2000, scoped, tag = 'scratch operand']
  %s0 = inlined_call_operand.hbm [shape: f32[2,4,256], index: 0, kind: input, shape index: {}]
  %s1 = inlined_call_operand.vmem [shape: f32[4,9], index: 1, kind: input, shape index: {}]
  %s2 = inlined_call_operand.vmem [shape: f32[8,4], index: 2, kind: input, shape index: {}]
  %s3 = inlined_call_operand.vmem [shape: f32[3,256], index: 3, kind: input, shape index: {}]
  %s4 = inlined_call_operand.hbm [shape: f32[2,8,256], index: 4, kind: output, shape index: {}]
  %s5 = sld [smem:[#allocation0]]
  $region30: #{tpu_custom_call.1} parent=0
    _
  %s7 = ssub.s32 1, %s5
  %s8 = scalar_select 0, %s7, %s5
  $region1: #{tpu_custom_call.1} parent=0
    #allocation3 [shape = 'u8[8192]{0}', space=vmem, size = 0x2000, scoped, tag = 'input window, operand 0, single buffered']
    #allocation4 [shape = 's32[1]{0}', space=sflag, size = 0x4, scoped, tag = 'scoped memory for tpu_custom_call.1']
    #allocation5 [shape = 's32[1]{0}', space=sflag, size = 0x4, scoped, tag = 'scoped memory for tpu_custom_call.1']
    #allocation6 [shape = 'u8[16384]{0}', space=vmem, size = 0x4000, scoped, tag = 'output window, operand 0, single buffered']
    %9 = vsyncpa [#allocation4], 0
    %10 = vsyncpa [#allocation5], 0
    // Predicated region
    $region2: #{tpu_custom_call.1} parent=1 // pred_check
      _
    $region3: #{tpu_custom_call.1} parent=1 // pred_check_branch
      %12 = sbr.rel (0) target = $region5
    $region4: #{tpu_custom_call.1} parent=1 // pred_region
      %14 = vsyncadd [#allocation4], 0
      %s15 = sshll.u32 %s0, 4
      %s16 = int_to_ptr.hbm [resolvable:$true] %s15
      %s17 = sshll.u32 [#allocation3], 4
      %s18 = int_to_ptr.vmem [resolvable:$true] %s17
      %23 = dma.hbm_to_vmem [thread:$0]  %s16, 256, %s18, [#allocation4], 128, 128, 8
    $region5: #{tpu_custom_call.1} parent=1 // pred_fallthru
      _
    // Predicated region
    $region6: #{tpu_custom_call.1} parent=1 // pred_check
      _
    $region7: #{tpu_custom_call.1} parent=1 // pred_check_branch
      %25 = sbr.rel (0) target = $region9
    $region8: #{tpu_custom_call.1} parent=1 // pred_region
      _
    $region9: #{tpu_custom_call.1} parent=1 // pred_fallthru
      _
    // Predicated region
    $region10: #{tpu_custom_call.1} parent=1 // pred_check
      _
    $region11: #{tpu_custom_call.1} parent=1 // pred_check_branch
      %27 = sbr.rel (0) target = $region13
    $region12: #{tpu_custom_call.1} parent=1 // pred_region
      _
    $region13: #{tpu_custom_call.1} parent=1 // pred_fallthru
      _
    // Predicated region
    $region14: #{tpu_custom_call.1} parent=1 // pred_check
      _
    $region15: #{tpu_custom_call.1} parent=1 // pred_check_branch
      %29 = sbr.rel (0) target = $region17
    $region16: #{tpu_custom_call.1} parent=1 // pred_region
      _
    $region17: #{tpu_custom_call.1} parent=1 // pred_fallthru
      _
    // Predicated region
    $region18: #{tpu_custom_call.1} parent=1 // pred_check
      _
    $region19: #{tpu_custom_call.1} parent=1 // pred_check_branch
      %31 = sbr.rel (0) target = $region21
    $region20: #{tpu_custom_call.1} parent=1 // pred_region
      %33 = dma.done [#allocation4], 256
    $region21: #{tpu_custom_call.1} parent=1 // pred_fallthru
      _
    %34 = vst [vmem:[#allocation2] sm:$0xf] 0.0
    %35 = vst [vmem:[#allocation2 + $0xc] sm:$0xf] 0.0
    %v36 = vld [vmem:[%s1] sm:$0xf]
    %v37 = vld [vmem:[%s3] sm:$0x77]
    %v38 = vld [vmem:[%s2] sm:$0xff]
    %v39 = vld [vmem:[#allocation3] sm:$0xff]
    %40 = vst [vmem:[#allocation2 + $0x4] sm:$0xff] %v39
    %v41 = vld [vmem:[#allocation2] sm:$0xff]
    %v42 = vld [vmem:[#allocation2 + $0x8] sm:$0xf]
    %v44 = vperm.slane %v37, 0
    %v45 = vperm.slane %v37, 4
    %v48 = vperm.slane %v44, 0
    %v49 = vperm.slane %v45, 0
    %v52 = vrot.slane %v49, 4
    %vm53 = vcmask 1043456
    %v54 = vsel %vm53, %v48, %v52
    %55 = vrot.lane.b32.xlu0 %v54, 111
    %v56 = vpop.permute.xlu0 %55
    %v57 = vrot.slane %v56, 4
    %vm58 = vcmask 908288
    %v59 = vsel %vm58, %v57, %v56
    %v62 = vmul.f32 %v41, %v59
    %v63 = vmul.f32 %v42, %v57
    %65 = vset.pattern.permute.xlu0 0
    %66 = vperm.xlu0 %65, %v36
    %v67 = vpop.permute.xlu0 %66
    %v69 = vunpack.c.l.s4 839922192
    %v70 = vunpack.c.0.s8 %v69
    %v71 = vperm.slane %v67, %v70
    %v73 = vmul.f32 %v62, %v71
    %v74 = vmul.f32 %v63, %v71
    %v75 = vadd.f32 %v73, 0.0
    %v76 = vadd.f32 %v74, 0.0
    %77 = vset.pattern.permute.xlu0 1
    %78 = vperm.xlu0 %77, %v36
    %v79 = vpop.permute.xlu0 %78
    %v81 = vunpack.c.l.s4 839922192
    %v82 = vunpack.c.0.s8 %v81
    %v83 = vperm.slane %v79, %v82
    %v85 = vmul.f32 %v41, %v83
    %v86 = vmul.f32 %v42, %v83
    %89 = vrot.lane.b32.xlu0 %v85, 127
    %v90 = vpop.permute.xlu0 %89
    %91 = vrot.lane.b32.xlu0 %v86, 127
    %v92 = vpop.permute.xlu0 %91
    %v93 = vrot.slane %v90, 4
    %v94 = vrot.slane %v92, 4
    %v95 = vsel %vm53, %v93, %v94
    %vm96 = vcmask 1039360
    %v97 = vsel %vm96, %v90, %v95
    %v100 = vadd.f32 %v75, %v97
    %v101 = vadd.f32 %v76, %v92
    %v102 = vperm.slane %v37, 2
    %v103 = vperm.slane %v37, 6
    %v106 = vperm.slane %v102, 2
    %v107 = vperm.slane %v103, 2
    %v110 = vrot.slane %v107, 4
    %v111 = vsel %vm53, %v106, %v110
    %112 = vrot.lane.b32.xlu0 %v111, 113
    %v113 = vpop.permute.xlu0 %112
    %v114 = vrot.slane %v113, 4
    %vm115 = vcmask 924672
    %v116 = vsel %vm115, %v114, %v113
    %v119 = vmul.f32 %v41, %v116
    %v120 = vmul.f32 %v42, %v114
    %121 = vset.pattern.permute.xlu0 2
    %122 = vperm.xlu0 %121, %v36
    %v123 = vpop.permute.xlu0 %122
    %v125 = vunpack.c.l.s4 839922192
    %v126 = vunpack.c.0.s8 %v125
    %v127 = vperm.slane %v123, %v126
    %v129 = vmul.f32 %v119, %v127
    %v130 = vmul.f32 %v120, %v127
    %133 = vrot.lane.b32.xlu0 %v129, 126
    %v134 = vpop.permute.xlu0 %133
    %135 = vrot.lane.b32.xlu0 %v130, 126
    %v136 = vpop.permute.xlu0 %135
    %v137 = vrot.slane %v134, 4
    %v138 = vrot.slane %v136, 4
    %v139 = vsel %vm53, %v137, %v138
    %vm140 = vcmask 1031168
    %v141 = vsel %vm140, %v134, %v139
    %v144 = vadd.f32 %v100, %v141
    %v145 = vadd.f32 %v101, %v136
    %146 = vrot.lane.b32.xlu0 %v54, 127
    %v147 = vpop.permute.xlu0 %146
    %v148 = vrot.slane %v147, 4
    %v149 = vsel %vm96, %v148, %v147
    %v152 = vmul.f32 %v41, %v149
    %v153 = vmul.f32 %v42, %v148
    %154 = vset.pattern.permute.xlu0 3
    %155 = vperm.xlu0 %154, %v36
    %v156 = vpop.permute.xlu0 %155
    %v158 = vunpack.c.l.s4 839922192
    %v159 = vunpack.c.0.s8 %v158
    %v160 = vperm.slane %v156, %v159
    %v162 = vmul.f32 %v152, %v160
    %v163 = vmul.f32 %v153, %v160
    %166 = vrot.lane.b32.xlu0 %v162, 112
    %v167 = vpop.permute.xlu0 %166
    %168 = vrot.lane.b32.xlu0 %v163, 112
    %v169 = vpop.permute.xlu0 %168
    %v170 = vrot.slane %v167, 4
    %v171 = vrot.slane %v169, 4
    %v172 = vsel %vm53, %v170, %v171
    %vm173 = vcmask 916480
    %v174 = vsel %vm173, %v167, %v172
    %v177 = vadd.f32 %v144, %v174
    %v178 = vadd.f32 %v145, %v169
    %v179 = vld [vmem:[#allocation2 + $0x4] sm:$0xff]
    %180 = vset.pattern.permute.xlu0 4
    %181 = vperm.xlu0 %180, %v36
    %v182 = vpop.permute.xlu0 %181
    %v184 = vunpack.c.l.s4 839922192
    %v185 = vunpack.c.0.s8 %v184
    %v186 = vperm.slane %v182, %v185
    %v188 = vmul.f32 %v179, %v186
    %190 = vrot.lane.b32.xlu0 %v188, 111
    %v191 = vpop.permute.xlu0 %190
    %v192 = vrot.slane %v191, 4
    %v193 = vsel %vm58, %v192, %v191
    %v196 = vadd.f32 %v177, %v193
    %v197 = vadd.f32 %v178, %v192
    %v198 = vld [vmem:[#allocation2 + $0x4] sm:$0xff]
    %v199 = vld [vmem:[#allocation2 + $0xc] sm:$0xf]
    %200 = vrot.lane.b32.xlu0 %v111, 1
    %v201 = vpop.permute.xlu0 %200
    %v202 = vrot.slane %v201, 4
    %vm203 = vcmask 7168
    %v204 = vsel %vm203, %v202, %v201
    %v207 = vmul.f32 %v198, %v204
    %v208 = vmul.f32 %v199, %v202
    %209 = vset.pattern.permute.xlu0 5
    %210 = vperm.xlu0 %209, %v36
    %v211 = vpop.permute.xlu0 %210
    %v213 = vunpack.c.l.s4 839922192
    %v214 = vunpack.c.0.s8 %v213
    %v215 = vperm.slane %v211, %v214
    %v217 = vmul.f32 %v207, %v215
    %v218 = vmul.f32 %v208, %v215
    %221 = vrot.lane.b32.xlu0 %v217, 110
    %v222 = vpop.permute.xlu0 %221
    %223 = vrot.lane.b32.xlu0 %v218, 110
    %v224 = vpop.permute.xlu0 %223
    %v225 = vrot.slane %v222, 4
    %vm226 = vcmask 900096
    %v227 = vsel %vm226, %v225, %v222
    %v228 = vsel %vm226, %v225, %v224
    %v231 = vadd.f32 %v196, %v227
    %v232 = vadd.f32 %v197, %v228
    %233 = vrot.lane.b32.xlu0 %v54, 15
    %v234 = vpop.permute.xlu0 %233
    %v235 = vrot.slane %v234, 4
    %vm236 = vcmask 121856
    %v237 = vsel %vm236, %v235, %v234
    %v240 = vmul.f32 %v198, %v237
    %v241 = vmul.f32 %v199, %v235
    %242 = vset.pattern.permute.xlu0 6
    %243 = vperm.xlu0 %242, %v36
    %v244 = vpop.permute.xlu0 %243
    %v246 = vunpack.c.l.s4 839922192
    %v247 = vunpack.c.0.s8 %v246
    %v248 = vperm.slane %v244, %v247
    %v250 = vmul.f32 %v240, %v248
    %v251 = vmul.f32 %v241, %v248
    %254 = vrot.lane.b32.xlu0 %v250, 96
    %v255 = vpop.permute.xlu0 %254
    %256 = vrot.lane.b32.xlu0 %v251, 96
    %v257 = vpop.permute.xlu0 %256
    %v258 = vrot.slane %v255, 4
    %vm259 = vcmask 785408
    %v260 = vsel %vm259, %v258, %v255
    %v261 = vsel %vm259, %v258, %v257
    %v264 = vadd.f32 %v231, %v260
    %v265 = vadd.f32 %v232, %v261
    %266 = vset.pattern.permute.xlu0 7
    %267 = vperm.xlu0 %266, %v36
    %v268 = vpop.permute.xlu0 %267
    %v270 = vunpack.c.l.s4 839922192
    %v271 = vunpack.c.0.s8 %v270
    %v272 = vperm.slane %v268, %v271
    %v274 = vmul.f32 %v198, %v272
    %v275 = vmul.f32 %v199, %v272
    %278 = vrot.lane.b32.xlu0 %v274, 95
    %v279 = vpop.permute.xlu0 %278
    %280 = vrot.lane.b32.xlu0 %v275, 95
    %v281 = vpop.permute.xlu0 %280
    %v282 = vrot.slane %v279, 4
    %vm283 = vcmask 777216
    %v284 = vsel %vm283, %v282, %v279
    %v285 = vsel %vm283, %v282, %v281
    %v288 = vadd.f32 %v264, %v284
    %v289 = vadd.f32 %v265, %v285
    %290 = vrot.lane.b32.xlu0 %v111, 17
    %v291 = vpop.permute.xlu0 %290
    %v292 = vrot.slane %v291, 4
    %vm293 = vcmask 138240
    %v294 = vsel %vm293, %v292, %v291
    %v297 = vmul.f32 %v198, %v294
    %v298 = vmul.f32 %v199, %v292
    %299 = vset.pattern.permute.xlu0 8
    %300 = vperm.xlu0 %299, %v36
    %v301 = vpop.permute.xlu0 %300
    %v303 = vunpack.c.l.s4 839922192
    %v304 = vunpack.c.0.s8 %v303
    %v305 = vperm.slane %v301, %v304
    %v307 = vmul.f32 %v297, %v305
    %v308 = vmul.f32 %v298, %v305
    %311 = vrot.lane.b32.xlu0 %v307, 94
    %v312 = vpop.permute.xlu0 %311
    %313 = vrot.lane.b32.xlu0 %v308, 94
    %v314 = vpop.permute.xlu0 %313
    %v315 = vrot.slane %v312, 4
    %vm316 = vcmask 769024
    %v317 = vsel %vm316, %v315, %v312
    %v318 = vsel %vm316, %v315, %v314
    %v321 = vadd.f32 %v288, %v317
    %v322 = vadd.f32 %v289, %v318
    %325 = vst [vmem:[#allocation1] ss:$2 sm:$0xff] %v321
    %s326 = scalar_lea.vmem [#allocation1], 16
    %327 = vst [vmem:[%s326] ss:$2 sm:$0xff] %v322
    %v328 = vld.sshfl [vmem:[#allocation1] sm:$0xff pattern:$0x75316420]
    %v329 = vld.sshfl [vmem:[#allocation1 + $0x8] sm:$0xff pattern:$0x75316420]
    %v330 = vld.sshfl [vmem:[#allocation1 + $0x10] sm:$0xff pattern:$0x75316420]
    %331 = vrot.lane.b32.xlu0 %v328, 17
    %v332 = vpop.permute.xlu0 %331
    %333 = vrot.lane.b32.xlu0 %v329, 17
    %v334 = vpop.permute.xlu0 %333
    %335 = vrot.lane.b32.xlu0 %v330, 17
    %v336 = vpop.permute.xlu0 %335
    %v337 = vsel %vm293, %v332, %v334
    %v338 = vsel %vm293, %v334, %v336
    %vm339 = vcmask 31744
    %v341 = vsel %vm339, %v38, 0
    %v343 = vsel %vm53, %v337, 0
    %v345 = vsel %vm53, %v338, 0
    %347 = vmatpush.msra.mxu0 0.0
    %348 = vmatpush.msra.mxu0 0.0
    %349 = vmatpush.msra.mxu0 0.0
    %350 = vmatpush.msra.mxu0 0.0
    %351 = vmatpush.msra.mxu0 0.0
    %352 = vmatpush.msra.mxu0 0.0
    %353 = vmatpush.msra.mxu0 0.0
    %354 = vmatpush.msra.mxu0 0.0
    %355 = vmatpush.msra.mxu0 0.0
    %356 = vmatpush.msra.mxu0 0.0
    %357 = vmatpush.msra.mxu0 0.0
    %358 = vmatpush.msra.mxu0 0.0
    %359 = vmatpush.msra.mxu0 0.0
    %360 = vmatpush.msra.mxu0 0.0
    %361 = vmatpush.msra.mxu0 0.0
    %362 = vmatpush.msra.mxu0 %v343
    %363 = vmatmul.f32.gmra.mxu0 %v341
    %v364 = vpop.f32.mrf.mxu0
    %v365 = vadd.f32 0.0, %v364
    %366 = vdwg.mxu0
    %367 = vmatpush.msra.mxu0 0.0
    %368 = vmatpush.msra.mxu0 0.0
    %369 = vmatpush.msra.mxu0 0.0
    %370 = vmatpush.msra.mxu0 0.0
    %371 = vmatpush.msra.mxu0 0.0
    %372 = vmatpush.msra.mxu0 0.0
    %373 = vmatpush.msra.mxu0 0.0
    %374 = vmatpush.msra.mxu0 0.0
    %375 = vmatpush.msra.mxu0 0.0
    %376 = vmatpush.msra.mxu0 0.0
    %377 = vmatpush.msra.mxu0 0.0
    %378 = vmatpush.msra.mxu0 0.0
    %379 = vmatpush.msra.mxu0 0.0
    %380 = vmatpush.msra.mxu0 0.0
    %381 = vmatpush.msra.mxu0 0.0
    %382 = vmatpush.msra.mxu0 %v345
    %383 = vmatmul.f32.gmra.mxu0 %v341
    %v384 = vpop.f32.mrf.mxu0
    %v385 = vadd.f32 0.0, %v384
    %386 = vdwg.mxu0
    %387 = vst [vmem:[#allocation6] sm:$0xff] %v365
    %388 = vst [vmem:[#allocation6 + $0x8] sm:$0xff] %v385
    %s389 = scalar_lea.vmem [#allocation3], 8
    %v390 = vld [vmem:[%s389] sm:$0xff]
    %391 = vst [vmem:[#allocation2 + $0x4] sm:$0xff] %v390
    %v392 = vld [vmem:[#allocation2] sm:$0xff]
    %v393 = vld [vmem:[#allocation2 + $0x8] sm:$0xf]
    %v394 = vmul.f32 %v392, %v59
    %v395 = vmul.f32 %v393, %v57
    %v396 = vmul.f32 %v394, %v71
    %v397 = vmul.f32 %v395, %v71
    %v398 = vadd.f32 %v396, 0.0
    %v399 = vadd.f32 %v397, 0.0
    %v400 = vmul.f32 %v392, %v83
    %v401 = vmul.f32 %v393, %v83
    %404 = vrot.lane.b32.xlu0 %v400, 127
    %v405 = vpop.permute.xlu0 %404
    %406 = vrot.lane.b32.xlu0 %v401, 127
    %v407 = vpop.permute.xlu0 %406
    %v408 = vrot.slane %v405, 4
    %v409 = vrot.slane %v407, 4
    %v410 = vsel %vm53, %v408, %v409
    %v411 = vsel %vm96, %v405, %v410
    %v414 = vadd.f32 %v398, %v411
    %v415 = vadd.f32 %v399, %v407
    %v416 = vmul.f32 %v392, %v116
    %v417 = vmul.f32 %v393, %v114
    %v418 = vmul.f32 %v416, %v127
    %v419 = vmul.f32 %v417, %v127
    %422 = vrot.lane.b32.xlu0 %v418, 126
    %v423 = vpop.permute.xlu0 %422
    %424 = vrot.lane.b32.xlu0 %v419, 126
    %v425 = vpop.permute.xlu0 %424
    %v426 = vrot.slane %v423, 4
    %v427 = vrot.slane %v425, 4
    %v428 = vsel %vm53, %v426, %v427
    %v429 = vsel %vm140, %v423, %v428
    %v432 = vadd.f32 %v414, %v429
    %v433 = vadd.f32 %v415, %v425
    %v434 = vmul.f32 %v392, %v149
    %v435 = vmul.f32 %v393, %v148
    %v436 = vmul.f32 %v434, %v160
    %v437 = vmul.f32 %v435, %v160
    %440 = vrot.lane.b32.xlu0 %v436, 112
    %v441 = vpop.permute.xlu0 %440
    %442 = vrot.lane.b32.xlu0 %v437, 112
    %v443 = vpop.permute.xlu0 %442
    %v444 = vrot.slane %v441, 4
    %v445 = vrot.slane %v443, 4
    %v446 = vsel %vm53, %v444, %v445
    %v447 = vsel %vm173, %v441, %v446
    %v450 = vadd.f32 %v432, %v447
    %v451 = vadd.f32 %v433, %v443
    %v452 = vld [vmem:[#allocation2 + $0x4] sm:$0xff]
    %v453 = vmul.f32 %v452, %v186
    %455 = vrot.lane.b32.xlu0 %v453, 111
    %v456 = vpop.permute.xlu0 %455
    %v457 = vrot.slane %v456, 4
    %v458 = vsel %vm58, %v457, %v456
    %v461 = vadd.f32 %v450, %v458
    %v462 = vadd.f32 %v451, %v457
    %v463 = vld [vmem:[#allocation2 + $0x4] sm:$0xff]
    %v464 = vld [vmem:[#allocation2 + $0xc] sm:$0xf]
    %v465 = vmul.f32 %v463, %v204
    %v466 = vmul.f32 %v464, %v202
    %v467 = vmul.f32 %v465, %v215
    %v468 = vmul.f32 %v466, %v215
    %471 = vrot.lane.b32.xlu0 %v467, 110
    %v472 = vpop.permute.xlu0 %471
    %473 = vrot.lane.b32.xlu0 %v468, 110
    %v474 = vpop.permute.xlu0 %473
    %v475 = vrot.slane %v472, 4
    %v476 = vsel %vm226, %v475, %v472
    %v477 = vsel %vm226, %v475, %v474
    %v480 = vadd.f32 %v461, %v476
    %v481 = vadd.f32 %v462, %v477
    %v482 = vmul.f32 %v463, %v237
    %v483 = vmul.f32 %v464, %v235
    %v484 = vmul.f32 %v482, %v248
    %v485 = vmul.f32 %v483, %v248
    %488 = vrot.lane.b32.xlu0 %v484, 96
    %v489 = vpop.permute.xlu0 %488
    %490 = vrot.lane.b32.xlu0 %v485, 96
    %v491 = vpop.permute.xlu0 %490
    %v492 = vrot.slane %v489, 4
    %v493 = vsel %vm259, %v492, %v489
    %v494 = vsel %vm259, %v492, %v491
    %v497 = vadd.f32 %v480, %v493
    %v498 = vadd.f32 %v481, %v494
    %v499 = vmul.f32 %v463, %v272
    %v500 = vmul.f32 %v464, %v272
    %503 = vrot.lane.b32.xlu0 %v499, 95
    %v504 = vpop.permute.xlu0 %503
    %505 = vrot.lane.b32.xlu0 %v500, 95
    %v506 = vpop.permute.xlu0 %505
    %v507 = vrot.slane %v504, 4
    %v508 = vsel %vm283, %v507, %v504
    %v509 = vsel %vm283, %v507, %v506
    %v512 = vadd.f32 %v497, %v508
    %v513 = vadd.f32 %v498, %v509
    %v514 = vmul.f32 %v463, %v294
    %v515 = vmul.f32 %v464, %v292
    %v516 = vmul.f32 %v514, %v305
    %v517 = vmul.f32 %v515, %v305
    %520 = vrot.lane.b32.xlu0 %v516, 94
    %v521 = vpop.permute.xlu0 %520
    %522 = vrot.lane.b32.xlu0 %v517, 94
    %v523 = vpop.permute.xlu0 %522
    %v524 = vrot.slane %v521, 4
    %v525 = vsel %vm316, %v524, %v521
    %v526 = vsel %vm316, %v524, %v523
    %v529 = vadd.f32 %v512, %v525
    %v530 = vadd.f32 %v513, %v526
    %533 = vst [vmem:[#allocation1] ss:$2 sm:$0xff] %v529
    %s534 = scalar_lea.vmem [#allocation1], 16
    %535 = vst [vmem:[%s534] ss:$2 sm:$0xff] %v530
    %v536 = vld.sshfl [vmem:[#allocation1] sm:$0xff pattern:$0x75316420]
    %v537 = vld.sshfl [vmem:[#allocation1 + $0x8] sm:$0xff pattern:$0x75316420]
    %v538 = vld.sshfl [vmem:[#allocation1 + $0x10] sm:$0xff pattern:$0x75316420]
    %539 = vrot.lane.b32.xlu0 %v536, 17
    %v540 = vpop.permute.xlu0 %539
    %541 = vrot.lane.b32.xlu0 %v537, 17
    %v542 = vpop.permute.xlu0 %541
    %543 = vrot.lane.b32.xlu0 %v538, 17
    %v544 = vpop.permute.xlu0 %543
    %v545 = vsel %vm293, %v540, %v542
    %v546 = vsel %vm293, %v542, %v544
    %v547 = vsel %vm53, %v545, 0
    %v549 = vsel %vm53, %v546, 0
    %551 = vmatpush.msra.mxu0 0.0
    %552 = vmatpush.msra.mxu0 0.0
    %553 = vmatpush.msra.mxu0 0.0
    %554 = vmatpush.msra.mxu0 0.0
    %555 = vmatpush.msra.mxu0 0.0
    %556 = vmatpush.msra.mxu0 0.0
    %557 = vmatpush.msra.mxu0 0.0
    %558 = vmatpush.msra.mxu0 0.0
    %559 = vmatpush.msra.mxu0 0.0
    %560 = vmatpush.msra.mxu0 0.0
    %561 = vmatpush.msra.mxu0 0.0
    %562 = vmatpush.msra.mxu0 0.0
    %563 = vmatpush.msra.mxu0 0.0
    %564 = vmatpush.msra.mxu0 0.0
    %565 = vmatpush.msra.mxu0 0.0
    %566 = vmatpush.msra.mxu0 %v547
    %567 = vmatmul.f32.gmra.mxu0 %v341
    %v568 = vpop.f32.mrf.mxu0
    %v569 = vadd.f32 0.0, %v568
    %570 = vdwg.mxu0
    %571 = vmatpush.msra.mxu0 0.0
    %572 = vmatpush.msra.mxu0 0.0
    %573 = vmatpush.msra.mxu0 0.0
    %574 = vmatpush.msra.mxu0 0.0
    %575 = vmatpush.msra.mxu0 0.0
    %576 = vmatpush.msra.mxu0 0.0
    %577 = vmatpush.msra.mxu0 0.0
    %578 = vmatpush.msra.mxu0 0.0
    %579 = vmatpush.msra.mxu0 0.0
    %580 = vmatpush.msra.mxu0 0.0
    %581 = vmatpush.msra.mxu0 0.0
    %582 = vmatpush.msra.mxu0 0.0
    %583 = vmatpush.msra.mxu0 0.0
    %584 = vmatpush.msra.mxu0 0.0
    %585 = vmatpush.msra.mxu0 0.0
    %586 = vmatpush.msra.mxu0 %v549
    %587 = vmatmul.f32.gmra.mxu0 %v341
    %v588 = vpop.f32.mrf.mxu0
    %v589 = vadd.f32 0.0, %v588
    %590 = vdwg.mxu0
    %s591 = scalar_lea.vmem [#allocation6], 16
    %592 = vst [vmem:[%s591] sm:$0xff] %v569
    %593 = vst [vmem:[%s591 + $0x8] sm:$0xff] %v589
    // Predicated region
    $region22: #{tpu_custom_call.1} parent=1 // pred_check
      _
    $region23: #{tpu_custom_call.1} parent=1 // pred_check_branch
      %595 = sbr.rel (0) target = $region25
    $region24: #{tpu_custom_call.1} parent=1 // pred_region
      %597 = vsyncadd [#allocation5], 0
      %s598 = sshll.u32 [#allocation6], 4
      %s599 = int_to_ptr.vmem [resolvable:$true] %s598
      %s600 = sshll.u32 %s4, 4
      %s601 = int_to_ptr.hbm [resolvable:$true] %s600
      %606 = dma.vmem_to_hbm [thread:$0]  %s599, 512, %s601, [#allocation5], 256, 256, 16
    $region25: #{tpu_custom_call.1} parent=1 // pred_fallthru
      _
    // Predicated region
    $region26: #{tpu_custom_call.1} parent=1 // pred_check
      _
    $region27: #{tpu_custom_call.1} parent=1 // pred_check_branch
      %608 = sbr.rel (0) target = $region29
    $region28: #{tpu_custom_call.1} parent=1 // pred_region
      %610 = dma.done [#allocation5], 512
    $region29: #{tpu_custom_call.1} parent=1 // pred_fallthru
      _
    %611 = vsyncpa [#allocation4], 1
    %612 = vsyncpa [#allocation5], 1

</llo_original>
